<compile_context>
chip_gen: v6e
topology: v6e:2x2x1
jax: 0.10.0
libtpu: 0.0.40
codegen_flags: <defaults>
</compile_context>

<pallas_src>
import functools
import math

import jax
import jax.numpy as jnp
from jax.experimental import pallas as pl
from jax.experimental.pallas import tpu as pltpu


# ----------------------------------------------------------------------------
# Parameter setup (deterministic, mirrors PositionalEncoding.__init__)
# ----------------------------------------------------------------------------
def make_positional_table(d_model, max_period=10000.0, max_len=500):
    position = jnp.arange(max_len, dtype=jnp.float32)[:, None]            # [L, 1]
    div_term = jnp.exp(
        jnp.arange(0, d_model, 2, dtype=jnp.float32)
        * (-math.log(max_period) / d_model)
    )                                                                      # [ceil(D/2)]
    pe = jnp.zeros((max_len, d_model), dtype=jnp.float32)
    pe = pe.at[:, 0::2].set(jnp.sin(position * div_term))
    if d_model % 2 != 0:
        pe = pe.at[:, 1::2].set(jnp.cos(position * div_term[:-1]))
    else:
        pe = pe.at[:, 1::2].set(jnp.cos(position * div_term))
    # PyTorch: pe.unsqueeze(0).transpose(0, 1) -> [max_len, 1, d_model]
    return pe[:, None, :]


# ----------------------------------------------------------------------------
# Kernels
# ----------------------------------------------------------------------------
def _pe_add_kernel(pe_ref, x_ref, o_ref):
    # eval-mode forward: x + pe   (dropout is identity)
    # pe block is (ts, 1, D); broadcast over the batch (sublane) axis of x.
    o_ref[...] = x_ref[...] + pe_ref[...]


def _pe_add_dropout_kernel(seed_ref, pe_ref, x_ref, o_ref, *, threshold, scale):
    # training-mode forward: inverted dropout applied to (x + pe)
    y = x_ref[...] + pe_ref[...]
    # distinct stream per grid block; caller must thread a fresh seed per step
    block_id = pl.program_id(0) * pl.num_programs(1) + pl.program_id(1)
    pltpu.prng_seed(seed_ref[0] + block_id)
    bits = pltpu.bitcast(pltpu.prng_random_bits(y.shape), jnp.uint32)
    # keep iff bits >= round(p * 2^32)  ->  P(keep) = 1 - p, no float convert
    # TODO(synk): if v7x profiling shows the PRNG/VPU slot binding for bf16
    # inputs, compare 16-bit halves of each u32 to halve random-bit volume.
    keep = bits >= jnp.uint32(threshold)
    scale_c = jnp.asarray(scale, dtype=y.dtype)       # stay in input dtype
    zero_c = jnp.zeros((), dtype=y.dtype)
    o_ref[...] = jnp.where(keep, y * scale_c, zero_c).astype(o_ref.dtype)


# ----------------------------------------------------------------------------
# Tiling heuristic
# ----------------------------------------------------------------------------
def _tile_plan(S, B, D, elem_bytes, target_block_bytes=4 << 20, min_total_blocks=4):
    """Pick (seq_tile, batch_tile) for blocks of the native [S, B, D] layout.

    Constraints: block dims (tb, D) must each be a multiple of (8, 128) or
    equal the full array dim (D is always kept full; tb is full B or a
    multiple of 8).  Blocks target ~4 MiB so x/out double-buffering stays
    ~16 MiB, and we only require a few total blocks (DMA overlap + both v7x
    TensorCores) instead of over-fragmenting the grid.
    """
    # batch tile: keep full B unless even an 8-seq-row block is far past target
    if B > 8 and 8 * B * D * elem_bytes > 2 * target_block_bytes:
        tb = max(8, (target_block_bytes // max(1, 8 * D * elem_bytes)) // 8 * 8)
        tb = min(tb, (B // 8) * 8)
    else:
        tb = B

    # sequence tile
    if S <= 8:
        ts = S
    else:
        rows = max(8, target_block_bytes // max(1, tb * D * elem_bytes))
        rows = min(rows, S)
        ts = max(8, (rows // 8) * 8)

    # guarantee a handful of grid steps (pipelining + v7x 2-core sharding)
    def nblocks(ts_, tb_):
        return pl.cdiv(S, ts_) * pl.cdiv(B, tb_)

    while nblocks(ts, tb) < min_total_blocks:
        if ts >= 16:
            ts = max(8, ((ts // 2) // 8) * 8)
        elif tb >= 16:
            tb = max(8, ((tb // 2) // 8) * 8)
        else:
            break
    return ts, tb


# ----------------------------------------------------------------------------
# Wrapper
# ----------------------------------------------------------------------------
def positional_encoding(x, pe_table, *, dropout_p=0.1, training=False, seed=0):
    """x: [S, B, D];  pe_table: [max_len, 1, D] (as registered by the module)."""
    S, B, D = x.shape
    max_len = pe_table.shape[0]
    if S > max_len:
        raise ValueError(f"sequence length {S} exceeds max_len {max_len}")

    elem_bytes = jnp.dtype(x.dtype).itemsize

    # Small [S, 1, D] table; the batch broadcast happens inside the kernel, so
    # no extra S*B*D array is ever written/read from HBM.
    # TODO(synk): PyTorch adds the fp32 buffer and lets promotion happen; we
    # cast pe to x.dtype up front (tiny quantization for bf16/fp8 inputs).
    pe = pe_table[:S].astype(x.dtype)                                     # [S, 1, D]

    ts, tb = _tile_plan(S, B, D, elem_bytes)
    grid = (pl.cdiv(S, ts), pl.cdiv(B, tb))

    # NOTE: output lane dim is D; lane-dense when D is a multiple of 128
    # (typical transformer widths).  For D < 128 the stores are lane-masked,
    # which is inherent to the [S, B, D] layout and only matters for tiny D.
    x_spec = pl.BlockSpec((ts, tb, D), lambda i, j, *_: (i, j, 0))
    pe_spec = pl.BlockSpec((ts, 1, D), lambda i, j, *_: (i, 0, 0))
    out_spec = pl.BlockSpec((ts, tb, D), lambda i, j, *_: (i, j, 0))
    out_shape = jax.ShapeDtypeStruct((S, B, D), x.dtype)

    # explicit VMEM budget: 2 big double-buffered streams (x, out) + tiny pe,
    # with headroom; stays under v7x's 64 MiB physical VMEM.
    block_bytes = ts * tb * D * elem_bytes
    pe_bytes = ts * D * elem_bytes
    vmem_bytes = 2 * (2 * block_bytes + pe_bytes)
    vmem_limit = int(min(48 << 20, max(32 << 20, 2 * vmem_bytes)))
    cparams = pltpu.CompilerParams(
        dimension_semantics=("parallel", "parallel"),   # both axes independent
        vmem_limit_bytes=vmem_limit)

    if (not training) or dropout_p <= 0.0:
        return pl.pallas_call(
            _pe_add_kernel,
            grid_spec=pltpu.PrefetchScalarGridSpec(
                num_scalar_prefetch=0,
                grid=grid,
                in_specs=[pe_spec, x_spec],
                out_specs=out_spec,
            ),
            out_shape=out_shape,
            compiler_params=cparams,
        )(pe, x)

    if dropout_p >= 1.0:
        return jnp.zeros_like(x)

    # training mode: dropout with hardware PRNG, integer-threshold keep test
    threshold = min(int(round(float(dropout_p) * float(2 ** 32))), 2 ** 32 - 1)
    scale = 1.0 / (1.0 - float(dropout_p))
    seed_arr = jnp.asarray([seed], dtype=jnp.int32)

    return pl.pallas_call(
        functools.partial(_pe_add_dropout_kernel, threshold=threshold, scale=scale),
        grid_spec=pltpu.PrefetchScalarGridSpec(
            num_scalar_prefetch=1,
            grid=grid,
            in_specs=[pe_spec, x_spec],
            out_specs=out_spec,
        ),
        out_shape=out_shape,
        compiler_params=cparams,
    )(seed_arr, pe, x)


# ----------------------------------------------------------------------------
# Demo / check
# ----------------------------------------------------------------------------
if __name__ == "__main__":
    S, B, D = 8, 2, 32
    key = jax.random.PRNGKey(0)
    x = jax.random.normal(key, (S, B, D), dtype=jnp.float32)

    pe_table = make_positional_table(d_model=D, max_period=10000.0, max_len=500)
    ref = x + pe_table[:S]                              # plain-JAX reference

    # eval-mode forward (dropout is identity); deterministic reference check.
    out = positional_encoding(x, pe_table, dropout_p=0.1, training=False)
    out = jax.block_until_ready(out)
    assert out.shape == (S, B, D)
    assert jnp.allclose(out, ref, atol=1e-6, rtol=1e-6)

    # training-mode forward uses the TPU hardware PRNG (pltpu.prng_*), which
    # has no CPU/interpreter lowering -> only exercise it on an actual TPU.
    if jax.default_backend() == "tpu":
        p = 0.1
        out_drop = positional_encoding(
            x, pe_table, dropout_p=p, training=True, seed=123)
        out_drop = jax.block_until_ready(out_drop)
        assert out_drop.shape == (S, B, D)
        assert bool(jnp.all(jnp.isfinite(out_drop)))
        scaled_ref = ref / (1.0 - p)
        ok = jnp.all(
            (jnp.abs(out_drop) < 1e-6) | (jnp.abs(out_drop - scaled_ref) < 1e-4)
        )
        assert bool(ok)

    print("KERNEL_OK")
</pallas_src>

<mosaic_0001>
module attributes {stable_mosaic.version = 11 : i64} {
  func.func @_pe_add_kernel(%arg0: i32, %arg1: i32, %arg2: memref<8x1x32xf32, #tpu.memory_space<vmem>>, %arg3: memref<8x2x32xf32, #tpu.memory_space<vmem>>, %arg4: memref<8x2x32xf32, #tpu.memory_space<vmem>>) attributes {dimension_semantics = [#tpu.dimension_semantics<parallel>, #tpu.dimension_semantics<parallel>], iteration_bounds = array<i64: 1, 1>, scalar_prefetch = 0 : i64, scratch_operands = 0 : i64, tpu.core_type = #tpu.core_type<tc>, window_params = [{transform_indices = @transform_0, window_bounds = array<i64: 8, 1, 32>}, {transform_indices = @transform_1, window_bounds = array<i64: 8, 2, 32>}, {transform_indices = @transform_2, window_bounds = array<i64: 8, 2, 32>}]} {
    %c0 = arith.constant 0 : index
    %c0_0 = arith.constant 0 : index
    %c0_1 = arith.constant 0 : index
    %0 = vector.load %arg3[%c0, %c0_0, %c0_1] : memref<8x2x32xf32, #tpu.memory_space<vmem>>, vector<8x2x32xf32>
    %c0_2 = arith.constant 0 : index
    %c0_3 = arith.constant 0 : index
    %c0_4 = arith.constant 0 : index
    %1 = vector.load %arg2[%c0_2, %c0_3, %c0_4] : memref<8x1x32xf32, #tpu.memory_space<vmem>>, vector<8x1x32xf32>
    %2 = vector.broadcast %1 : vector<8x1x32xf32> to vector<8x2x32xf32>
    %3 = arith.addf %0, %2 : vector<8x2x32xf32>
    %c0_5 = arith.constant 0 : index
    %c0_6 = arith.constant 0 : index
    %c0_7 = arith.constant 0 : index
    %4 = vector.load %arg4[%c0_5, %c0_6, %c0_7] : memref<8x2x32xf32, #tpu.memory_space<vmem>>, vector<8x2x32xf32>
    tpu.vector_store %arg4[%c0_5, %c0_6, %c0_7], %3 {strides = array<i32>} : memref<8x2x32xf32, #tpu.memory_space<vmem>>, vector<8x2x32xf32>,
    return
  }
  func.func @transform_0(%arg0: i32, %arg1: i32) -> (i32, i32, i32) {
    %c0_i32 = arith.constant 0 : i32
    %c0_i32_0 = arith.constant 0 : i32
    %c0_i32_1 = arith.constant 0 : i32
    return %arg0, %c0_i32, %c0_i32_0 : i32, i32, i32
  }
  func.func @transform_1(%arg0: i32, %arg1: i32) -> (i32, i32, i32) {
    %c0_i32 = arith.constant 0 : i32
    %c0_i32_0 = arith.constant 0 : i32
    return %arg0, %arg1, %c0_i32 : i32, i32, i32
  }
  func.func @transform_2(%arg0: i32, %arg1: i32) -> (i32, i32, i32) {
    %c0_i32 = arith.constant 0 : i32
    %c0_i32_0 = arith.constant 0 : i32
    return %arg0, %arg1, %c0_i32 : i32, i32, i32
  }
}

</mosaic_0001>

<llo_original>
// kernel: tpu_custom_call.1
$region0: #{tpu_custom_call.1}
  #allocation0 [shape = 'u32[]', space=smem, size = 0x4, offset = 0x4, fixed_abs, tag = 'smem constant byte address 0x4 - core index']
  #allocation1 [shape = 'u32[144,128]{1,0:T(1,128)}', space=vmem, size = 0x12000, scoped, tag = 'internal scratch']
  %s0 = inlined_call_operand.hbm [shape: f32[8,1,32], index: 0, kind: input, shape index: {}]
  %s1 = inlined_call_operand.hbm [shape: f32[8,2,32], index: 1, kind: input, shape index: {}]
  %s2 = inlined_call_operand.hbm [shape: f32[8,2,32], index: 2, kind: output, shape index: {}]
  %s3 = sld [smem:[#allocation0]]
  $region26: #{tpu_custom_call.1} parent=0
    _
  %s5 = ssub.s32 1, %s3
  %s6 = scalar_select 0, %s5, %s3
  $region1: #{tpu_custom_call.1} parent=0
    #allocation2 [shape = 'u8[4096]{0}', space=vmem, size = 0x1000, scoped, tag = 'input window, operand 0, single buffered']
    #allocation3 [shape = 's32[1]{0}', space=sflag, size = 0x4, scoped, tag = 'scoped memory for tpu_custom_call.1']
    #allocation4 [shape = 's32[1]{0}', space=sflag, size = 0x4, scoped, tag = 'scoped memory for tpu_custom_call.1']
    #allocation5 [shape = 'u8[8192]{0}', space=vmem, size = 0x2000, scoped, tag = 'input window, operand 1, single buffered']
    #allocation6 [shape = 's32[1]{0}', space=sflag, size = 0x4, scoped, tag = 'scoped memory for tpu_custom_call.1']
    #allocation7 [shape = 'u8[8192]{0}', space=vmem, size = 0x2000, scoped, tag = 'output window, operand 0, single buffered']
    %7 = vsyncpa [#allocation3], 0
    %8 = vsyncpa [#allocation6], 0
    %9 = vsyncpa [#allocation4], 0
    // Predicated region
    $region2: #{tpu_custom_call.1} parent=1 // pred_check
      _
    $region3: #{tpu_custom_call.1} parent=1 // pred_check_branch
      %11 = sbr.rel (0) target = $region5
    $region4: #{tpu_custom_call.1} parent=1 // pred_region
      %s13 = ssub.s32 128, 128
      %14 = vsyncadd [#allocation3], %s13
      %s15 = sshll.u32 [#allocation2], 4
      %s16 = int_to_ptr.vmem [resolvable:$true] %s15
      %21 = dma.hbm_to_vmem [thread:$0]  %s0, 128, %s16, [#allocation3], 16, 16, 1
    $region5: #{tpu_custom_call.1} parent=1 // pred_fallthru
      _
    // Predicated region
    $region6: #{tpu_custom_call.1} parent=1 // pred_check
      _
    $region7: #{tpu_custom_call.1} parent=1 // pred_check_branch
      %23 = sbr.rel (0) target = $region9
    $region8: #{tpu_custom_call.1} parent=1 // pred_region
      %s25 = ssub.s32 256, 256
      %26 = vsyncadd [#allocation6], %s25
      %s27 = sshll.u32 [#allocation5], 4
      %s28 = int_to_ptr.vmem [resolvable:$true] %s27
      %33 = dma.hbm_to_vmem [thread:$0]  %s1, 256, %s28, [#allocation6], 32, 32, 2
    $region9: #{tpu_custom_call.1} parent=1 // pred_fallthru
      _
    // Predicated region
    $region10: #{tpu_custom_call.1} parent=1 // pred_check
      _
    $region11: #{tpu_custom_call.1} parent=1 // pred_check_branch
      %35 = sbr.rel (0) target = $region13
    $region12: #{tpu_custom_call.1} parent=1 // pred_region
      %36 = dma.done [#allocation3], 128
    $region13: #{tpu_custom_call.1} parent=1 // pred_fallthru
      _
    // Predicated region
    $region14: #{tpu_custom_call.1} parent=1 // pred_check
      _
    $region15: #{tpu_custom_call.1} parent=1 // pred_check_branch
      %38 = sbr.rel (0) target = $region17
    $region16: #{tpu_custom_call.1} parent=1 // pred_region
      %39 = dma.done [#allocation6], 256
    $region17: #{tpu_custom_call.1} parent=1 // pred_fallthru
      _
    %v40 = vld [vmem:[#allocation5] sm:$0x3]
    %v41 = vld [vmem:[#allocation5 + $0x2] sm:$0x3]
    %v42 = vld [vmem:[#allocation5 + $0x4] sm:$0x3]
    %v43 = vld [vmem:[#allocation5 + $0x6] sm:$0x3]
    %v44 = vld [vmem:[#allocation5 + $0x8] sm:$0x3]
    %v45 = vld [vmem:[#allocation5 + $0xa] sm:$0x3]
    %v46 = vld [vmem:[#allocation5 + $0xc] sm:$0x3]
    %v47 = vld [vmem:[#allocation5 + $0xe] sm:$0x3]
    %v48 = vld [vmem:[#allocation2] sm:$0x1]
    %v49 = vld [vmem:[#allocation2 + $0x1] sm:$0x1]
    %v50 = vld [vmem:[#allocation2 + $0x2] sm:$0x1]
    %v51 = vld [vmem:[#allocation2 + $0x3] sm:$0x1]
    %v52 = vld [vmem:[#allocation2 + $0x4] sm:$0x1]
    %v53 = vld [vmem:[#allocation2 + $0x5] sm:$0x1]
    %v54 = vld [vmem:[#allocation2 + $0x6] sm:$0x1]
    %v55 = vld [vmem:[#allocation2 + $0x7] sm:$0x1]
    %v64 = vlaneseq
    %v65 = vshrl.u32 %v64, 7
    %v66 = vsub.s32 0, %v65
    %v67 = vrot.slane %v48, %v66
    %v68 = vlaneseq
    %v69 = vshrl.u32 %v68, 7
    %v70 = vsub.s32 0, %v69
    %v71 = vrot.slane %v49, %v70
    %v72 = vlaneseq
    %v73 = vshrl.u32 %v72, 7
    %v74 = vsub.s32 0, %v73
    %v75 = vrot.slane %v50, %v74
    %v76 = vlaneseq
    %v77 = vshrl.u32 %v76, 7
    %v78 = vsub.s32 0, %v77
    %v79 = vrot.slane %v51, %v78
    %v80 = vlaneseq
    %v81 = vshrl.u32 %v80, 7
    %v82 = vsub.s32 0, %v81
    %v83 = vrot.slane %v52, %v82
    %v84 = vlaneseq
    %v85 = vshrl.u32 %v84, 7
    %v86 = vsub.s32 0, %v85
    %v87 = vrot.slane %v53, %v86
    %v88 = vlaneseq
    %v89 = vshrl.u32 %v88, 7
    %v90 = vsub.s32 0, %v89
    %v91 = vrot.slane %v54, %v90
    %v92 = vlaneseq
    %v93 = vshrl.u32 %v92, 7
    %v94 = vsub.s32 0, %v93
    %v95 = vrot.slane %v55, %v94
    %v104 = vadd.f32 %v40, %v67
    %v105 = vadd.f32 %v41, %v71
    %v106 = vadd.f32 %v42, %v75
    %v107 = vadd.f32 %v43, %v79
    %v108 = vadd.f32 %v44, %v83
    %v109 = vadd.f32 %v45, %v87
    %v110 = vadd.f32 %v46, %v91
    %v111 = vadd.f32 %v47, %v95
    %vm112 = vcmask 254976
    %113 = vst.msk [vmem:[#allocation7] sm:$0x3] %vm112, %v104
    %114 = vst.msk [vmem:[#allocation7 + $0x2] sm:$0x3] %vm112, %v105
    %115 = vst.msk [vmem:[#allocation7 + $0x4] sm:$0x3] %vm112, %v106
    %116 = vst.msk [vmem:[#allocation7 + $0x6] sm:$0x3] %vm112, %v107
    %117 = vst.msk [vmem:[#allocation7 + $0x8] sm:$0x3] %vm112, %v108
    %118 = vst.msk [vmem:[#allocation7 + $0xa] sm:$0x3] %vm112, %v109
    %119 = vst.msk [vmem:[#allocation7 + $0xc] sm:$0x3] %vm112, %v110
    %120 = vst.msk [vmem:[#allocation7 + $0xe] sm:$0x3] %vm112, %v111
    // Predicated region
    $region18: #{tpu_custom_call.1} parent=1 // pred_check
      _
    $region19: #{tpu_custom_call.1} parent=1 // pred_check_branch
      %122 = sbr.rel (0) target = $region21
    $region20: #{tpu_custom_call.1} parent=1 // pred_region
      %s124 = ssub.s32 256, 256
      %125 = vsyncadd [#allocation4], %s124
      %s126 = sshll.u32 [#allocation7], 4
      %s127 = int_to_ptr.vmem [resolvable:$true] %s126
      %132 = dma.vmem_to_hbm [thread:$0]  %s127, 256, %s2, [#allocation4], 32, 32, 2
    $region21: #{tpu_custom_call.1} parent=1 // pred_fallthru
      _
    // Predicated region
    $region22: #{tpu_custom_call.1} parent=1 // pred_check
      _
    $region23: #{tpu_custom_call.1} parent=1 // pred_check_branch
      %134 = sbr.rel (0) target = $region25
    $region24: #{tpu_custom_call.1} parent=1 // pred_region
      %135 = dma.done [#allocation4], 256
    $region25: #{tpu_custom_call.1} parent=1 // pred_fallthru
      _
    %136 = vsyncpa [#allocation3], 1
    %137 = vsyncpa [#allocation6], 1
    %138 = vsyncpa [#allocation4], 1

</llo_original>
